<compile_context>
chip_gen: v6e
topology: v6e:2x2x1
jax: 0.10.0
libtpu: 0.0.40
codegen_flags: <defaults>
</compile_context>

<pallas_src>
import math
import functools

import jax
import jax.numpy as jnp
from jax.experimental import pallas as pl
from jax.experimental.pallas import tpu as pltpu


# ------------------------------------------------------------------
# Parameter / buffer setup (glue, plain JAX) — deterministic, no files.
# ------------------------------------------------------------------
def make_pe_buffer(embedding_dim: int, max_len: int) -> jnp.ndarray:
    """Reproduces the registered buffer `pe` of shape [max_len, 1, embedding_dim]."""
    position = jnp.arange(max_len, dtype=jnp.float32)[:, None]               # [max_len, 1]
    div_term = jnp.exp(
        jnp.arange(0, embedding_dim, 2, dtype=jnp.float32)
        * (-math.log(10000.0) / embedding_dim)
    )                                                                         # [E//2]
    angles = position * div_term                                              # [max_len, E//2]
    pe = jnp.zeros((max_len, 1, embedding_dim), dtype=jnp.float32)
    pe = pe.at[:, 0, 0::2].set(jnp.sin(angles))
    pe = pe.at[:, 0, 1::2].set(jnp.cos(angles))
    return pe


# ------------------------------------------------------------------
# Pallas kernel: x + pe  (+ optional inverted dropout via the HW PRNG)
# ------------------------------------------------------------------
def _pe_kernel(seed_ref, x_ref, pe_ref, o_ref, *, p: float, training: bool):
    # Elementwise add with sublane broadcast over batch: (TS, B, E) + (TS, 1, E).
    y = x_ref[...] + pe_ref[...]

    if training and p > 0.0:
        if p >= 1.0:
            # torch.nn.Dropout(p=1.0) zeroes everything; avoid 1/(1-p) div-by-zero.
            y = jnp.zeros_like(y)
        else:
            # Inverted dropout using the TPU hardware PRNG.  Seed is offset by
            # program_id so every seq-tile draws an independent random stream.
            # NOTE: the caller must vary `seed` per training step or the mask
            # repeats across calls.
            pltpu.prng_seed(seed_ref[0] + pl.program_id(0))
            bits = pltpu.bitcast(pltpu.prng_random_bits(y.shape), jnp.uint32)
            # int(p * 2**32) truncation shifts P(keep) from (1-p) by <= 2^-32;
            # intentional and negligible.
            threshold = jnp.uint32(min(int(p * (2.0 ** 32)), 2 ** 32 - 1))
            keep = bits >= threshold                    # P(keep) = 1 - p
            y = jnp.where(keep, y * (1.0 / (1.0 - p)), jnp.zeros_like(y))
            # TODO(synk): bit-exact parity with torch's dropout RNG stream is not
            # reproducible; statistics (keep prob, 1/(1-p) scaling) match.

    o_ref[...] = y.astype(o_ref.dtype)


# ------------------------------------------------------------------
# Generation-aware sizing helpers
# ------------------------------------------------------------------
def _device_caps() -> tuple[int, int]:
    """Returns (physical VMEM bytes per TensorCore, TensorCores per chip)."""
    kind = ""
    try:
        kind = jax.devices()[0].device_kind.lower()
    except Exception:
        pass
    if "v7" in kind or "7x" in kind:
        return 64 * 1024 * 1024, 2           # v7x: 64 MiB VMEM/TC, 2 TCs/chip
    if "v5" in kind or "v6" in kind:
        return 128 * 1024 * 1024, 1          # v5e / v6e: 128 MiB VMEM, 1 TC
    return 64 * 1024 * 1024, 1               # unknown: be conservative


def _vmem_budgets() -> tuple[int, int, int]:
    """(tile footprint budget, vmem_limit_bytes, num_cores) for this chip."""
    vmem_phys, num_cores = _device_caps()
    if vmem_phys >= 96 * 1024 * 1024:
        # v5e / v6e: 128 MiB physical — push the double-buffered footprint hard.
        return 64 * 1024 * 1024, 96 * 1024 * 1024, num_cores
    # v7x (64 MiB physical per TC) / unknown: leave headroom.
    return 36 * 1024 * 1024, 52 * 1024 * 1024, num_cores


def _sublane_pad(itemsize: int) -> int:
    # Sub-32-bit dtypes pack along sublanes: f32 tiles are 8 rows, bf16 16, i8 32.
    return {4: 8, 2: 16, 1: 32}.get(itemsize, 8)


def _choose_tile_rows(S: int, B: int, E: int, itemsize: int, *,
                      budget_bytes: int, num_cores: int,
                      training_dropout: bool) -> int:
    """Largest seq-tile whose *padded*, double-buffered VMEM footprint fits the
    budget, capped so multi-TC chips keep num_tiles >= 2."""
    pad = _sublane_pad(itemsize)
    b_pad = -(-B // pad) * pad
    # Per seq row, double-buffered: x block + out block (b_pad*E each) and the
    # pe block, whose middle dim of 1 pads to a full `pad`-sublane tile.
    per_row = 2 * (2 * b_pad * E + pad * E) * itemsize
    if training_dropout:
        # prng_random_bits produces u32 per element; keep-mask / select chain
        # keeps another full-tile temporary live.  Single-instance headroom.
        per_row += 2 * b_pad * E * 4
    ts = max(1, budget_bytes // max(per_row, 1))
    ts = min(ts, S)
    if num_cores >= 2 and S >= 2:
        # Keep num_tiles >= 2 so the "parallel" grid axis feeds both TensorCores.
        ts = min(ts, -(-S // 2))
    if ts >= 8:
        ts -= ts % 8          # tidy multiple of 8 rows when possible
    return max(ts, 1)


# ------------------------------------------------------------------
# Wrapper
# ------------------------------------------------------------------
def positional_encoding(
    x: jnp.ndarray,
    pe: jnp.ndarray,
    *,
    dropout_p: float = 0.1,
    training: bool = False,
    seed: int = 0,
    tile_rows: int | None = None,
) -> jnp.ndarray:
    """x: [seq_len, batch, embedding_dim]; pe: [max_len, 1, embedding_dim].

    training=True uses the on-chip TPU PRNG for dropout and therefore needs a
    real TPU backend (the PRNG primitives have no CPU/interpret lowering)."""
    S, B, E = x.shape
    # Cast pe once in the wrapper: halves pe DMA traffic / VMEM when x is bf16
    # and avoids per-element widen/narrow work on the VPU.
    pe_slice = pe[:S].astype(x.dtype)                       # [S, 1, E]

    # Lane-density guard: last dim not a multiple of 128 forces masked partial
    # stores (vst.msk, measured up to ~4.5x slower on the non-compute portion),
    # so fall back to plain XLA for those shapes.
    if E % 128 != 0:
        y = x + pe_slice
        if training and dropout_p > 0.0:
            if dropout_p >= 1.0:
                return jnp.zeros_like(y)
            keep = jax.random.bernoulli(jax.random.PRNGKey(seed), 1.0 - dropout_p, y.shape)
            y = jnp.where(keep, y / (1.0 - dropout_p), 0.0)
        return y.astype(x.dtype)

    seed_arr = jnp.array([seed], dtype=jnp.int32)
    itemsize = jnp.dtype(x.dtype).itemsize
    budget, vmem_limit, num_cores = _vmem_budgets()
    training_dropout = bool(training) and 0.0 < float(dropout_p) < 1.0

    TS = tile_rows if tile_rows is not None else _choose_tile_rows(
        S, B, E, itemsize, budget_bytes=budget, num_cores=num_cores,
        training_dropout=training_dropout)
    num_tiles = pl.cdiv(S, TS)

    kernel = functools.partial(_pe_kernel, p=float(dropout_p), training=bool(training))

    return pl.pallas_call(
        kernel,
        out_shape=jax.ShapeDtypeStruct((S, B, E), x.dtype),
        grid_spec=pltpu.PrefetchScalarGridSpec(
            num_scalar_prefetch=1,                          # seed lands in SMEM
            grid=(num_tiles,),
            in_specs=[
                pl.BlockSpec((TS, B, E), lambda i, seed: (i, 0, 0)),
                pl.BlockSpec((TS, 1, E), lambda i, seed: (i, 0, 0)),
            ],
            out_specs=pl.BlockSpec((TS, B, E), lambda i, seed: (i, 0, 0)),
        ),
        # x (flat input index 1, after the prefetched seed) aliases output 0:
        # when the caller donates x, the output reuses its HBM buffer; otherwise
        # XLA inserts a copy, so semantics are unchanged.
        input_output_aliases={1: 0},
        compiler_params=pltpu.CompilerParams(
            # Seq-tiles are independent -> shard across v7x's 2 TensorCores;
            # harmless no-op on single-core v5e/v6e.
            dimension_semantics=("parallel",),
            vmem_limit_bytes=vmem_limit,
        ),
    )(seed_arr, x, pe_slice)


# ------------------------------------------------------------------
# Demo / self-check
# ------------------------------------------------------------------
if __name__ == "__main__":
    # E=128 keeps the output lane-dense so the Pallas kernel path is exercised.
    SEQ, BATCH, EMBED = 16, 8, 128
    MAX_LEN = 64

    key = jax.random.PRNGKey(0)
    x = jax.random.normal(key, (SEQ, BATCH, EMBED), dtype=jnp.float32)
    pe = make_pe_buffer(EMBED, MAX_LEN)

    # Reference computed *before* the kernel call (output aliases x's buffer
    # when donated; here x is not donated, so it is preserved either way).
    ref = x + pe[:SEQ]

    # eval mode (dropout is identity) — deterministic, checked against reference
    out_eval = positional_encoding(x, pe, dropout_p=0.1, training=False)
    out_eval = jax.block_until_ready(out_eval)
    assert out_eval.shape == (SEQ, BATCH, EMBED)
    assert jnp.allclose(out_eval, ref, atol=1e-6, rtol=1e-6), "eval-mode mismatch"

    # training mode (on-chip inverted dropout with the HW PRNG) — only exercised
    # on a real TPU backend: pltpu.prng_seed/prng_random_bits have no CPU lowering.
    if jax.default_backend() == "tpu":
        out_train = positional_encoding(x, pe, dropout_p=0.1, training=True, seed=1234)
        out_train = jax.block_until_ready(out_train)
        assert out_train.shape == (SEQ, BATCH, EMBED)
        # Sanity: every element is either 0 or (x+pe)/(1-p).
        scaled = ref / (1.0 - 0.1)
        ok = jnp.isclose(out_train, 0.0) | jnp.isclose(out_train, scaled, atol=1e-5)
        assert bool(jnp.all(ok)), "training-mode dropout values inconsistent"

    print("KERNEL_OK")
</pallas_src>

<mosaic_0001>
module attributes {stable_mosaic.version = 11 : i64} {
  func.func @_pe_kernel(%arg0: i32, %arg1: memref<1xi32, #tpu.memory_space<smem>>, %arg2: memref<16x8x128xf32, #tpu.memory_space<vmem>>, %arg3: memref<16x1x128xf32, #tpu.memory_space<vmem>>, %arg4: memref<16x8x128xf32, #tpu.memory_space<vmem>>) attributes {dimension_semantics = [#tpu.dimension_semantics<parallel>], iteration_bounds = array<i64: 1>, scalar_prefetch = 1 : i64, scratch_operands = 0 : i64, tpu.core_type = #tpu.core_type<tc>, window_params = [{transform_indices = @transform_0, window_bounds = array<i64: 16, 8, 128>}, {transform_indices = @transform_1, window_bounds = array<i64: 16, 1, 128>}, {transform_indices = @transform_2, window_bounds = array<i64: 16, 8, 128>}]} {
    %c0 = arith.constant 0 : index
    %c0_0 = arith.constant 0 : index
    %c0_1 = arith.constant 0 : index
    %0 = vector.load %arg2[%c0, %c0_0, %c0_1] : memref<16x8x128xf32, #tpu.memory_space<vmem>>, vector<16x8x128xf32>
    %c0_2 = arith.constant 0 : index
    %c0_3 = arith.constant 0 : index
    %c0_4 = arith.constant 0 : index
    %1 = vector.load %arg3[%c0_2, %c0_3, %c0_4] : memref<16x1x128xf32, #tpu.memory_space<vmem>>, vector<16x1x128xf32>
    %2 = vector.broadcast %1 : vector<16x1x128xf32> to vector<16x8x128xf32>
    %3 = arith.addf %0, %2 : vector<16x8x128xf32>
    %c0_5 = arith.constant 0 : index
    %c0_6 = arith.constant 0 : index
    %c0_7 = arith.constant 0 : index
    %4 = vector.load %arg4[%c0_5, %c0_6, %c0_7] : memref<16x8x128xf32, #tpu.memory_space<vmem>>, vector<16x8x128xf32>
    tpu.vector_store %arg4[%c0_5, %c0_6, %c0_7], %3 {strides = array<i32>} : memref<16x8x128xf32, #tpu.memory_space<vmem>>, vector<16x8x128xf32>,
    return
  }
  func.func @transform_0(%arg0: i32, %arg1: memref<1xi32, #tpu.memory_space<smem>>) -> (i32, i32, i32) {
    %c0_i32 = arith.constant 0 : i32
    %c0_i32_0 = arith.constant 0 : i32
    %c0_i32_1 = arith.constant 0 : i32
    return %arg0, %c0_i32, %c0_i32_0 : i32, i32, i32
  }
  func.func @transform_1(%arg0: i32, %arg1: memref<1xi32, #tpu.memory_space<smem>>) -> (i32, i32, i32) {
    %c0_i32 = arith.constant 0 : i32
    %c0_i32_0 = arith.constant 0 : i32
    %c0_i32_1 = arith.constant 0 : i32
    return %arg0, %c0_i32, %c0_i32_0 : i32, i32, i32
  }
  func.func @transform_2(%arg0: i32, %arg1: memref<1xi32, #tpu.memory_space<smem>>) -> (i32, i32, i32) {
    %c0_i32 = arith.constant 0 : i32
    %c0_i32_0 = arith.constant 0 : i32
    %c0_i32_1 = arith.constant 0 : i32
    return %arg0, %c0_i32, %c0_i32_0 : i32, i32, i32
  }
}

</mosaic_0001>

<llo_original>
// kernel: tpu_custom_call.1
$region0: #{tpu_custom_call.1}
  #allocation0 [shape = 'u32[]', space=smem, size = 0x4, offset = 0x4, fixed_abs, tag = 'smem constant byte address 0x4 - core index']
  #allocation1 [shape = 'u32[144,128]{1,0:T(1,128)}', space=vmem, size = 0x12000, scoped, tag = 'internal scratch']
  #allocation2 [shape = 's32[1]{0}', space=sflag, size = 0x4, scoped, tag = 'scoped memory for tpu_custom_call.1']
  #allocation3 [shape = 's32[1]{0:T(128)S(6)}', space=smem, size = 0x200, scoped, tag = 'prefetched SMEM operand 0']
  %s0 = inlined_call_operand.<no memory space> [shape: s32[1], index: 0, kind: input, shape index: {}]
  %s1 = inlined_call_operand.hbm [shape: f32[16,8,128], index: 1, kind: input, shape index: {}, may-alias: {1,3}]
  %s2 = inlined_call_operand.vmem [shape: f32[16,1,128], index: 2, kind: input, shape index: {}]
  %s3 = inlined_call_operand.hbm [shape: f32[16,8,128], index: 3, kind: output, shape index: {}, may-alias: {1,3}]
  %s4 = sld [smem:[#allocation0]]
  $region22: #{tpu_custom_call.1} parent=0
    _
  %s6 = ssub.s32 1, %s4
  %s7 = scalar_select 0, %s6, %s4
  %8 = sst [smem:[#allocation3]] %s0
  $region1: #{tpu_custom_call.1} parent=0
    #allocation4 [shape = 'u8[65536]{0}', space=vmem, size = 0x10000, scoped, tag = 'input window, operand 1, single buffered']
    #allocation5 [shape = 's32[1]{0}', space=sflag, size = 0x4, scoped, tag = 'scoped memory for tpu_custom_call.1']
    #allocation6 [shape = 's32[1]{0}', space=sflag, size = 0x4, scoped, tag = 'scoped memory for tpu_custom_call.1']
    #allocation7 [shape = 'u8[65536]{0}', space=vmem, size = 0x10000, scoped, tag = 'output window, operand 0, single buffered']
    %9 = vsyncpa [#allocation5], 0
    %10 = vsyncpa [#allocation6], 0
    // Predicated region
    $region2: #{tpu_custom_call.1} parent=1 // pred_check
      _
    $region3: #{tpu_custom_call.1} parent=1 // pred_check_branch
      %12 = sbr.rel (0) target = $region5
    $region4: #{tpu_custom_call.1} parent=1 // pred_region
      %s14 = ssub.s32 2048, 2048
      %15 = vsyncadd [#allocation5], %s14
      %s16 = sshll.u32 [#allocation4], 4
      %s17 = int_to_ptr.vmem [resolvable:$true] %s16
      %22 = dma.hbm_to_vmem [thread:$0]  %s1, 2048, %s17, [#allocation5], 128, 128, 8
    $region5: #{tpu_custom_call.1} parent=1 // pred_fallthru
      _
    // Predicated region
    $region6: #{tpu_custom_call.1} parent=1 // pred_check
      _
    $region7: #{tpu_custom_call.1} parent=1 // pred_check_branch
      %24 = sbr.rel (0) target = $region9
    $region8: #{tpu_custom_call.1} parent=1 // pred_region
      _
    $region9: #{tpu_custom_call.1} parent=1 // pred_fallthru
      _
    // Predicated region
    $region10: #{tpu_custom_call.1} parent=1 // pred_check
      _
    $region11: #{tpu_custom_call.1} parent=1 // pred_check_branch
      %26 = sbr.rel (0) target = $region13
    $region12: #{tpu_custom_call.1} parent=1 // pred_region
      %27 = dma.done [#allocation5], 2048
    $region13: #{tpu_custom_call.1} parent=1 // pred_fallthru
      _
    %v28 = vld [vmem:[#allocation4] sm:$0xff]
    %v29 = vld [vmem:[#allocation4 + $0x8] sm:$0xff]
    %v30 = vld [vmem:[#allocation4 + $0x10] sm:$0xff]
    %v31 = vld [vmem:[#allocation4 + $0x18] sm:$0xff]
    %v32 = vld [vmem:[#allocation4 + $0x20] sm:$0xff]
    %v33 = vld [vmem:[#allocation4 + $0x28] sm:$0xff]
    %v34 = vld [vmem:[#allocation4 + $0x30] sm:$0xff]
    %v35 = vld [vmem:[#allocation4 + $0x38] sm:$0xff]
    %v36 = vld [vmem:[#allocation4 + $0x40] sm:$0xff]
    %v37 = vld [vmem:[#allocation4 + $0x48] sm:$0xff]
    %v38 = vld [vmem:[#allocation4 + $0x50] sm:$0xff]
    %v39 = vld [vmem:[#allocation4 + $0x58] sm:$0xff]
    %v40 = vld [vmem:[#allocation4 + $0x60] sm:$0xff]
    %v41 = vld [vmem:[#allocation4 + $0x68] sm:$0xff]
    %v42 = vld [vmem:[#allocation4 + $0x70] sm:$0xff]
    %v43 = vld [vmem:[#allocation4 + $0x78] sm:$0xff]
    %v44 = vld [vmem:[%s2] sm:$0x1]
    %v45 = vld [vmem:[%s2 + $0x1] sm:$0x1]
    %v46 = vld [vmem:[%s2 + $0x2] sm:$0x1]
    %v47 = vld [vmem:[%s2 + $0x3] sm:$0x1]
    %v48 = vld [vmem:[%s2 + $0x4] sm:$0x1]
    %v49 = vld [vmem:[%s2 + $0x5] sm:$0x1]
    %v50 = vld [vmem:[%s2 + $0x6] sm:$0x1]
    %v51 = vld [vmem:[%s2 + $0x7] sm:$0x1]
    %v52 = vld [vmem:[%s2 + $0x8] sm:$0x1]
    %v53 = vld [vmem:[%s2 + $0x9] sm:$0x1]
    %v54 = vld [vmem:[%s2 + $0xa] sm:$0x1]
    %v55 = vld [vmem:[%s2 + $0xb] sm:$0x1]
    %v56 = vld [vmem:[%s2 + $0xc] sm:$0x1]
    %v57 = vld [vmem:[%s2 + $0xd] sm:$0x1]
    %v58 = vld [vmem:[%s2 + $0xe] sm:$0x1]
    %v59 = vld [vmem:[%s2 + $0xf] sm:$0x1]
    %v76 = vlaneseq
    %v77 = vshrl.u32 %v76, 7
    %v78 = vsub.s32 0, %v77
    %v79 = vrot.slane %v44, %v78
    %v80 = vlaneseq
    %v81 = vshrl.u32 %v80, 7
    %v82 = vsub.s32 0, %v81
    %v83 = vrot.slane %v45, %v82
    %v84 = vlaneseq
    %v85 = vshrl.u32 %v84, 7
    %v86 = vsub.s32 0, %v85
    %v87 = vrot.slane %v46, %v86
    %v88 = vlaneseq
    %v89 = vshrl.u32 %v88, 7
    %v90 = vsub.s32 0, %v89
    %v91 = vrot.slane %v47, %v90
    %v92 = vlaneseq
    %v93 = vshrl.u32 %v92, 7
    %v94 = vsub.s32 0, %v93
    %v95 = vrot.slane %v48, %v94
    %v96 = vlaneseq
    %v97 = vshrl.u32 %v96, 7
    %v98 = vsub.s32 0, %v97
    %v99 = vrot.slane %v49, %v98
    %v100 = vlaneseq
    %v101 = vshrl.u32 %v100, 7
    %v102 = vsub.s32 0, %v101
    %v103 = vrot.slane %v50, %v102
    %v104 = vlaneseq
    %v105 = vshrl.u32 %v104, 7
    %v106 = vsub.s32 0, %v105
    %v107 = vrot.slane %v51, %v106
    %v108 = vlaneseq
    %v109 = vshrl.u32 %v108, 7
    %v110 = vsub.s32 0, %v109
    %v111 = vrot.slane %v52, %v110
    %v112 = vlaneseq
    %v113 = vshrl.u32 %v112, 7
    %v114 = vsub.s32 0, %v113
    %v115 = vrot.slane %v53, %v114
    %v116 = vlaneseq
    %v117 = vshrl.u32 %v116, 7
    %v118 = vsub.s32 0, %v117
    %v119 = vrot.slane %v54, %v118
    %v120 = vlaneseq
    %v121 = vshrl.u32 %v120, 7
    %v122 = vsub.s32 0, %v121
    %v123 = vrot.slane %v55, %v122
    %v124 = vlaneseq
    %v125 = vshrl.u32 %v124, 7
    %v126 = vsub.s32 0, %v125
    %v127 = vrot.slane %v56, %v126
    %v128 = vlaneseq
    %v129 = vshrl.u32 %v128, 7
    %v130 = vsub.s32 0, %v129
    %v131 = vrot.slane %v57, %v130
    %v132 = vlaneseq
    %v133 = vshrl.u32 %v132, 7
    %v134 = vsub.s32 0, %v133
    %v135 = vrot.slane %v58, %v134
    %v136 = vlaneseq
    %v137 = vshrl.u32 %v136, 7
    %v138 = vsub.s32 0, %v137
    %v139 = vrot.slane %v59, %v138
    %v156 = vadd.f32 %v28, %v79
    %v157 = vadd.f32 %v29, %v83
    %v158 = vadd.f32 %v30, %v87
    %v159 = vadd.f32 %v31, %v91
    %v160 = vadd.f32 %v32, %v95
    %v161 = vadd.f32 %v33, %v99
    %v162 = vadd.f32 %v34, %v103
    %v163 = vadd.f32 %v35, %v107
    %v164 = vadd.f32 %v36, %v111
    %v165 = vadd.f32 %v37, %v115
    %v166 = vadd.f32 %v38, %v119
    %v167 = vadd.f32 %v39, %v123
    %v168 = vadd.f32 %v40, %v127
    %v169 = vadd.f32 %v41, %v131
    %v170 = vadd.f32 %v42, %v135
    %v171 = vadd.f32 %v43, %v139
    %172 = vst [vmem:[#allocation7] sm:$0xff] %v156
    %173 = vst [vmem:[#allocation7 + $0x8] sm:$0xff] %v157
    %174 = vst [vmem:[#allocation7 + $0x10] sm:$0xff] %v158
    %175 = vst [vmem:[#allocation7 + $0x18] sm:$0xff] %v159
    %176 = vst [vmem:[#allocation7 + $0x20] sm:$0xff] %v160
    %177 = vst [vmem:[#allocation7 + $0x28] sm:$0xff] %v161
    %178 = vst [vmem:[#allocation7 + $0x30] sm:$0xff] %v162
    %179 = vst [vmem:[#allocation7 + $0x38] sm:$0xff] %v163
    %180 = vst [vmem:[#allocation7 + $0x40] sm:$0xff] %v164
    %181 = vst [vmem:[#allocation7 + $0x48] sm:$0xff] %v165
    %182 = vst [vmem:[#allocation7 + $0x50] sm:$0xff] %v166
    %183 = vst [vmem:[#allocation7 + $0x58] sm:$0xff] %v167
    %184 = vst [vmem:[#allocation7 + $0x60] sm:$0xff] %v168
    %185 = vst [vmem:[#allocation7 + $0x68] sm:$0xff] %v169
    %186 = vst [vmem:[#allocation7 + $0x70] sm:$0xff] %v170
    %187 = vst [vmem:[#allocation7 + $0x78] sm:$0xff] %v171
    // Predicated region
    $region14: #{tpu_custom_call.1} parent=1 // pred_check
      _
    $region15: #{tpu_custom_call.1} parent=1 // pred_check_branch
      %189 = sbr.rel (0) target = $region17
    $region16: #{tpu_custom_call.1} parent=1 // pred_region
      %s191 = ssub.s32 2048, 2048
      %192 = vsyncadd [#allocation6], %s191
      %s193 = sshll.u32 [#allocation7], 4
      %s194 = int_to_ptr.vmem [resolvable:$true] %s193
      %199 = dma.vmem_to_hbm [thread:$0]  %s194, 2048, %s3, [#allocation6], 128, 128, 8
    $region17: #{tpu_custom_call.1} parent=1 // pred_fallthru
      _
    // Predicated region
    $region18: #{tpu_custom_call.1} parent=1 // pred_check
      _
    $region19: #{tpu_custom_call.1} parent=1 // pred_check_branch
      %201 = sbr.rel (0) target = $region21
    $region20: #{tpu_custom_call.1} parent=1 // pred_region
      %202 = dma.done [#allocation6], 2048
    $region21: #{tpu_custom_call.1} parent=1 // pred_fallthru
      _
    %203 = vsyncpa [#allocation5], 1
    %204 = vsyncpa [#allocation6], 1

</llo_original>
